<compile_context>
chip_gen: v7x
topology: tpu7x:2x2x1
jax: 0.10.0
libtpu: 0.0.40
codegen_flags: <defaults>
</compile_context>

<pallas_src>
import functools

import jax
import jax.numpy as jnp
from jax.experimental import pallas as pl
from jax.experimental.pallas import tpu as pltpu

LATENT_DIM = 10
THETA_DIM = 7
X_DIM = 6
THETA0_DIM = 7
ENC_IN = THETA_DIM + X_DIM + THETA0_DIM        # 20
ENC_PAD = 32                                   # enc_in lanes zero-padded to 32 (bf16 K tile)
XT0_DIM = X_DIM + THETA0_DIM                   # 13
DEC_IN = LATENT_DIM + XT0_DIM                  # 23
OUT_DIM = THETA_DIM + 2 * LATENT_DIM           # 27 = theta_hat | z_mean | z_logvar

# Packed-weight row offsets (all multiples of 16 -> bf16 (16,128) sublane-tile aligned).
R_WF = 0       # [32, 192] fused: encoder fc1 (lanes 0:128) + decoder fc1 [x|theta0] (lanes 128:192)
R_W2E = 32     # [128, 64]  encoder fc2        (lanes 64:128 zero)
R_WMULV = 160  # [64, 20]   fused mu||logvar   (lanes 20:128 zero)
R_W1DZ = 224   # [10, 64]   decoder fc1 z rows
R_W2D = 240    # [64, 128]  decoder fc2
R_W3D = 304    # [128, 7]   decoder fc3        (lanes 7:128 zero)
W_ROWS = 448
W_COLS = 256

# Packed-bias rows (f32 [8, 256]).
B_1E, B_2E, B_MULV, B_1D, B_2D, B_3D = 0, 1, 2, 3, 4, 5


def _round_up(n, m):
    return ((n + m - 1) // m) * m


def _cvae_kernel(enc_ref, eps_ref, w_ref, b_ref, out_ref):
    f32 = jnp.float32
    bf16 = jnp.bfloat16

    enc_in = enc_ref[...]                  # (TB, 32) bf16, cols 20:32 are zero padding
    eps = eps_ref[...]                     # (TB, 10) f32

    # ----- dot 1 (fused): encoder fc1 (cols 0:128) + decoder fc1 [x|theta0] branch (128:192) -----
    r1 = jnp.dot(enc_in, w_ref[R_WF:R_WF + ENC_PAD, :], preferred_element_type=f32)   # (TB, 256)
    h = jnp.maximum(r1[:, 0:128] + b_ref[B_1E:B_1E + 1, 0:128], 0.0)
    xt0_part = r1[:, 128:192]              # decoder-fc1 partial pre-activation (bias added later)

    # ----- dot 2: encoder fc2 : 128 -> 64 (N padded to 128 lanes: same MXU cost, aligned view) -----
    r2 = jnp.dot(h.astype(bf16), w_ref[R_W2E:R_W2E + 128, 0:128], preferred_element_type=f32)
    h2 = jnp.maximum(r2[:, 0:64] + b_ref[B_2E:B_2E + 1, 0:64], 0.0)

    # ----- dot 3: fused mu||logvar head : 64 -> 20 -----
    r3 = jnp.dot(h2.astype(bf16), w_ref[R_WMULV:R_WMULV + 64, 0:128], preferred_element_type=f32)
    mulv = r3[:, 0:2 * LATENT_DIM] + b_ref[B_MULV:B_MULV + 1, 0:2 * LATENT_DIM]
    z_mean = mulv[:, 0:LATENT_DIM]
    z_logvar = mulv[:, LATENT_DIM:2 * LATENT_DIM]

    # ----- reparameterize (f32 elementwise; exp goes to the EUP) -----
    z = z_mean + eps * jnp.exp(0.5 * z_logvar)

    # ----- dot 4: decoder fc1 z-branch, then add fused xt0 branch + bias, relu -----
    zdot = jnp.dot(z.astype(bf16), w_ref[R_W1DZ:R_W1DZ + LATENT_DIM, 0:64],
                   preferred_element_type=f32)
    hd = jnp.maximum(zdot + xt0_part + b_ref[B_1D:B_1D + 1, 0:64], 0.0)

    # ----- dot 5: decoder fc2 : 64 -> 128 -----
    r5 = jnp.dot(hd.astype(bf16), w_ref[R_W2D:R_W2D + 64, 0:128], preferred_element_type=f32)
    hd2 = jnp.maximum(r5 + b_ref[B_2D:B_2D + 1, 0:128], 0.0)

    # ----- dot 6: decoder fc3 : 128 -> 7 -----
    r6 = jnp.dot(hd2.astype(bf16), w_ref[R_W3D:R_W3D + 128, 0:128], preferred_element_type=f32)
    theta_hat = r6[:, 0:THETA_DIM] + b_ref[B_3D:B_3D + 1, 0:THETA_DIM]

    # Two direct sliced stores (no lane concat / extra full-slab vreg copy).
    out_ref[:, 0:THETA_DIM] = theta_hat
    out_ref[:, THETA_DIM:OUT_DIM] = mulv


def init_params(key):
    """Deterministic synthetic parameters (shapes match the PyTorch module).

    Weights stored [in_features, out_features]; biases [1, out_features]; all f32.
    """
    def linear(k, fan_in, fan_out):
        kw, kb = jax.random.split(k)
        scale = 1.0 / jnp.sqrt(jnp.float32(fan_in))
        w = jax.random.uniform(kw, (fan_in, fan_out), jnp.float32, -scale, scale)
        b = jax.random.uniform(kb, (1, fan_out), jnp.float32, -scale, scale)
        return w, b

    keys = jax.random.split(key, 7)
    p = {}
    p["w1e"], p["b1e"] = linear(keys[0], ENC_IN, 128)
    p["w2e"], p["b2e"] = linear(keys[1], 128, 64)
    p["wmu"], p["bmu"] = linear(keys[2], 64, LATENT_DIM)
    p["wlv"], p["blv"] = linear(keys[3], 64, LATENT_DIM)
    p["w1d"], p["b1d"] = linear(keys[4], DEC_IN, 64)
    p["w2d"], p["b2d"] = linear(keys[5], 64, 128)
    p["w3d"], p["b3d"] = linear(keys[6], 128, 7)
    return p


def pack_params(p):
    """Pack all weights into one bf16 [448, 256] buffer, all biases into one f32 [8, 256]."""
    bf16 = jnp.bfloat16
    wp = jnp.zeros((W_ROWS, W_COLS), bf16)

    # Fused first block: encoder fc1 in lanes 0:128; decoder-fc1 [x|theta0] rows in lanes 128:192,
    # aligned with enc_in columns 7:20 (theta rows stay zero). K zero-padded 20 -> 32.
    wf = jnp.zeros((ENC_PAD, 192), jnp.float32)
    wf = wf.at[0:ENC_IN, 0:128].set(p["w1e"])
    wf = wf.at[THETA_DIM:ENC_IN, 128:192].set(p["w1d"][LATENT_DIM:DEC_IN, :])
    wp = wp.at[R_WF:R_WF + ENC_PAD, 0:192].set(wf.astype(bf16))

    wp = wp.at[R_W2E:R_W2E + 128, 0:64].set(p["w2e"].astype(bf16))
    wp = wp.at[R_WMULV:R_WMULV + 64, 0:2 * LATENT_DIM].set(
        jnp.concatenate([p["wmu"], p["wlv"]], axis=1).astype(bf16))
    wp = wp.at[R_W1DZ:R_W1DZ + LATENT_DIM, 0:64].set(p["w1d"][0:LATENT_DIM, :].astype(bf16))
    wp = wp.at[R_W2D:R_W2D + 64, 0:128].set(p["w2d"].astype(bf16))
    wp = wp.at[R_W3D:R_W3D + 128, 0:THETA_DIM].set(p["w3d"].astype(bf16))

    bp = jnp.zeros((8, W_COLS), jnp.float32)

    def put_b(buf, b, r):
        return buf.at[r, 0:b.shape[1]].set(b[0])

    bp = put_b(bp, p["b1e"], B_1E)
    bp = put_b(bp, p["b2e"], B_2E)
    bp = put_b(bp, jnp.concatenate([p["bmu"], p["blv"]], axis=1), B_MULV)
    bp = put_b(bp, p["b1d"], B_1D)
    bp = put_b(bp, p["b2d"], B_2D)
    bp = put_b(bp, p["b3d"], B_3D)
    return wp, bp


@functools.partial(jax.jit, static_argnames=("tile_b",))
def cvae_forward(theta, x, theta0, eps, w_packed, b_packed, *, tile_b=1024):
    """Pallas CVAE forward. Returns (theta_hat, z_mean, z_logvar), matching the PyTorch module."""
    B = theta.shape[0]

    # Single wrapper-side concat, cast to bf16 (halves input DMA bytes). No separate xt0 input:
    # its decoder-fc1 contribution comes from lanes 128:192 of the fused first weight block.
    enc_in = jnp.concatenate([theta, x, theta0], axis=1).astype(jnp.bfloat16)   # (B, 20)

    # Batch tile: multiple of 16 (bf16 sublane tile). Pick the #grid-steps first, then the tile,
    # to avoid pathological padding (e.g. B=520 with tile 512). Default tile_b=1024 keeps >= 2
    # grid steps for large B so "parallel" can shard across v7x's two TensorCores; on v5e/v6e a
    # larger tile_b (single step) is marginally better.
    n_steps = max(1, -(-B // tile_b))
    tb = _round_up(-(-B // n_steps), 16)
    Bp = _round_up(B, tb)

    enc_in = jnp.pad(enc_in, ((0, Bp - B), (0, ENC_PAD - ENC_IN)))   # (Bp, 32) bf16
    eps_p = jnp.pad(eps, ((0, Bp - B), (0, 0)))                      # (Bp, 10) f32

    grid = (Bp // tb,)

    out = pl.pallas_call(
        _cvae_kernel,
        out_shape=jax.ShapeDtypeStruct((Bp, OUT_DIM), jnp.float32),
        grid_spec=pltpu.PrefetchScalarGridSpec(
            num_scalar_prefetch=0,
            grid=grid,
            in_specs=[
                pl.BlockSpec((tb, ENC_PAD), lambda i: (i, 0)),       # bf16 activations (batch tiles)
                pl.BlockSpec((tb, LATENT_DIM), lambda i: (i, 0)),    # eps (batch tiles)
                pl.BlockSpec((W_ROWS, W_COLS), lambda i: (0, 0)),    # packed weights (VMEM-resident)
                pl.BlockSpec((8, W_COLS), lambda i: (0, 0)),         # packed biases  (VMEM-resident)
            ],
            out_specs=pl.BlockSpec((tb, OUT_DIM), lambda i: (i, 0)),
        ),
        compiler_params=pltpu.CompilerParams(
            dimension_semantics=("parallel",),   # shard batch tiles across TCs on v7x
        ),
    )(enc_in, eps_p, w_packed, b_packed)

    theta_hat = out[:B, 0:THETA_DIM]
    z_mean = out[:B, THETA_DIM:THETA_DIM + LATENT_DIM]
    z_logvar = out[:B, THETA_DIM + LATENT_DIM:OUT_DIM]
    return theta_hat, z_mean, z_logvar


def _reference_forward(theta, x, theta0, eps, p):
    """Pure-JAX reference mirroring the PyTorch forward (bf16 weights, f32 accumulation)."""
    bf16 = jnp.bfloat16
    f32 = jnp.float32

    def lin(a, w, b):
        return jnp.dot(a.astype(bf16), w.astype(bf16), preferred_element_type=f32) + b

    enc_in = jnp.concatenate([theta, x, theta0], axis=1)
    h = jax.nn.relu(lin(enc_in, p["w1e"], p["b1e"]))
    h = jax.nn.relu(lin(h, p["w2e"], p["b2e"]))
    z_mean = lin(h, p["wmu"], p["bmu"])
    z_logvar = lin(h, p["wlv"], p["blv"])
    std = jnp.exp(0.5 * z_logvar)
    z = z_mean + eps * std
    dec_in = jnp.concatenate([z, x, theta0], axis=1)
    hd = jax.nn.relu(lin(dec_in, p["w1d"], p["b1d"]))
    hd = jax.nn.relu(lin(hd, p["w2d"], p["b2d"]))
    theta_hat = lin(hd, p["w3d"], p["b3d"])
    return theta_hat, z_mean, z_logvar


def _run_and_check(B, params, w_packed, b_packed, seed):
    key = jax.random.PRNGKey(seed)
    k_theta, k_x, k_theta0, k_eps = jax.random.split(key, 4)
    theta = jax.random.normal(k_theta, (B, THETA_DIM), jnp.float32)
    x = jax.random.normal(k_x, (B, X_DIM), jnp.float32)
    theta0 = jax.random.normal(k_theta0, (B, THETA0_DIM), jnp.float32)
    eps = jax.random.normal(k_eps, (B, LATENT_DIM), jnp.float32)   # torch.randn_like(std)

    out = cvae_forward(theta, x, theta0, eps, w_packed, b_packed)
    jax.block_until_ready(out)
    theta_hat, z_mean, z_logvar = out

    ref_th, ref_mu, ref_lv = _reference_forward(theta, x, theta0, eps, params)
    assert jnp.allclose(theta_hat, ref_th, atol=1e-3, rtol=1e-3)
    assert jnp.allclose(z_mean, ref_mu, atol=1e-3, rtol=1e-3)
    assert jnp.allclose(z_logvar, ref_lv, atol=1e-3, rtol=1e-3)


if __name__ == "__main__":
    key = jax.random.PRNGKey(0)
    k_params, _ = jax.random.split(key)
    params = init_params(k_params)
    w_packed, b_packed = pack_params(params)

    # Small batch (matches the module's tiny I/O dims): single grid step.
    _run_and_check(B=8, params=params, w_packed=w_packed, b_packed=b_packed, seed=1)
    # Larger batch exercises the batch grid (tile_b=1024 -> 2 pipelined / megacore-parallel steps).
    _run_and_check(B=2048, params=params, w_packed=w_packed, b_packed=b_packed, seed=2)

    print("KERNEL_OK")
</pallas_src>

<mosaic_0001>
module attributes {stable_mosaic.version = 11 : i64} {
  func.func @_cvae_kernel(%arg0: i32, %arg1: memref<16x32xbf16, #tpu.memory_space<vmem>>, %arg2: memref<16x10xf32, #tpu.memory_space<vmem>>, %arg3: memref<448x256xbf16, #tpu.memory_space<vmem>>, %arg4: memref<8x256xf32, #tpu.memory_space<vmem>>, %arg5: memref<16x27xf32, #tpu.memory_space<vmem>>) attributes {dimension_semantics = [#tpu.dimension_semantics<parallel>], iteration_bounds = array<i64: 1>, scalar_prefetch = 0 : i64, scratch_operands = 0 : i64, tpu.core_type = #tpu.core_type<tc>, window_params = [{transform_indices = @transform_0, window_bounds = array<i64: 16, 32>}, {transform_indices = @transform_1, window_bounds = array<i64: 16, 10>}, {pipeline_mode = #tpu.pipeline_mode<synchronous>, transform_indices = @transform_2, window_bounds = array<i64: 448, 256>}, {pipeline_mode = #tpu.pipeline_mode<synchronous>, transform_indices = @transform_3, window_bounds = array<i64: 8, 256>}, {transform_indices = @transform_4, window_bounds = array<i64: 16, 27>}]} {
    %c0 = arith.constant 0 : index
    %c0_0 = arith.constant 0 : index
    %0 = vector.load %arg1[%c0, %c0_0] : memref<16x32xbf16, #tpu.memory_space<vmem>>, vector<16x32xbf16>
    %c0_1 = arith.constant 0 : index
    %c0_2 = arith.constant 0 : index
    %1 = vector.load %arg2[%c0_1, %c0_2] : memref<16x10xf32, #tpu.memory_space<vmem>>, vector<16x10xf32>
    %c0_3 = arith.constant 0 : index
    %c0_4 = arith.constant 0 : index
    %2 = vector.load %arg3[%c0_3, %c0_4] : memref<448x256xbf16, #tpu.memory_space<vmem>>, vector<32x256xbf16>
    %cst = arith.constant dense<0.000000e+00> : vector<16x256xf32>
    %3 = tpu.matmul %0, %2, %cst {dimension_numbers = #tpu.dot_dimension_numbers<[1], [0], [0], [1], [0, 0, 1, 1], [], []>} : vector<16x32xbf16>, vector<32x256xbf16>, vector<16x256xf32> -> vector<16x256xf32>
    %4 = vector.extract_strided_slice %3 {offsets = [0, 0], sizes = [16, 128], strides = [1, 1]} : vector<16x256xf32> to vector<16x128xf32>
    %c0_5 = arith.constant 0 : index
    %c0_6 = arith.constant 0 : index
    %5 = vector.load %arg4[%c0_5, %c0_6] : memref<8x256xf32, #tpu.memory_space<vmem>>, vector<1x128xf32>
    %6 = vector.broadcast %5 : vector<1x128xf32> to vector<16x128xf32>
    %7 = arith.addf %4, %6 : vector<16x128xf32>
    %cst_7 = arith.constant 0.000000e+00 : f32
    %8 = vector.broadcast %cst_7 : f32 to vector<16x128xf32>
    %9 = arith.maximumf %7, %8 : vector<16x128xf32>
    %10 = vector.extract_strided_slice %3 {offsets = [0, 128], sizes = [16, 64], strides = [1, 1]} : vector<16x256xf32> to vector<16x64xf32>
    %11 = arith.truncf %9 : vector<16x128xf32> to vector<16x128xbf16>
    %c32 = arith.constant 32 : index
    %c0_8 = arith.constant 0 : index
    %12 = vector.load %arg3[%c32, %c0_8] : memref<448x256xbf16, #tpu.memory_space<vmem>>, vector<128x128xbf16>
    %cst_9 = arith.constant dense<0.000000e+00> : vector<16x128xf32>
    %13 = tpu.matmul %11, %12, %cst_9 {dimension_numbers = #tpu.dot_dimension_numbers<[1], [0], [0], [1], [0, 0, 1, 1], [], []>} : vector<16x128xbf16>, vector<128x128xbf16>, vector<16x128xf32> -> vector<16x128xf32>
    %14 = vector.extract_strided_slice %13 {offsets = [0, 0], sizes = [16, 64], strides = [1, 1]} : vector<16x128xf32> to vector<16x64xf32>
    %c1 = arith.constant 1 : index
    %c0_10 = arith.constant 0 : index
    %15 = vector.load %arg4[%c1, %c0_10] : memref<8x256xf32, #tpu.memory_space<vmem>>, vector<1x64xf32>
    %16 = vector.broadcast %15 : vector<1x64xf32> to vector<16x64xf32>
    %17 = arith.addf %14, %16 : vector<16x64xf32>
    %cst_11 = arith.constant 0.000000e+00 : f32
    %18 = vector.broadcast %cst_11 : f32 to vector<16x64xf32>
    %19 = arith.maximumf %17, %18 : vector<16x64xf32>
    %20 = arith.truncf %19 : vector<16x64xf32> to vector<16x64xbf16>
    %c160 = arith.constant 160 : index
    %c0_12 = arith.constant 0 : index
    %21 = vector.load %arg3[%c160, %c0_12] : memref<448x256xbf16, #tpu.memory_space<vmem>>, vector<64x128xbf16>
    %cst_13 = arith.constant dense<0.000000e+00> : vector<16x128xf32>
    %22 = tpu.matmul %20, %21, %cst_13 {dimension_numbers = #tpu.dot_dimension_numbers<[1], [0], [0], [1], [0, 0, 1, 1], [], []>} : vector<16x64xbf16>, vector<64x128xbf16>, vector<16x128xf32> -> vector<16x128xf32>
    %23 = vector.extract_strided_slice %22 {offsets = [0, 0], sizes = [16, 20], strides = [1, 1]} : vector<16x128xf32> to vector<16x20xf32>
    %c2 = arith.constant 2 : index
    %c0_14 = arith.constant 0 : index
    %24 = vector.load %arg4[%c2, %c0_14] : memref<8x256xf32, #tpu.memory_space<vmem>>, vector<1x20xf32>
    %25 = vector.broadcast %24 : vector<1x20xf32> to vector<16x20xf32>
    %26 = arith.addf %23, %25 : vector<16x20xf32>
    %27 = vector.extract_strided_slice %26 {offsets = [0, 0], sizes = [16, 10], strides = [1, 1]} : vector<16x20xf32> to vector<16x10xf32>
    %28 = vector.extract_strided_slice %26 {offsets = [0, 10], sizes = [16, 10], strides = [1, 1]} : vector<16x20xf32> to vector<16x10xf32>
    %cst_15 = arith.constant 5.000000e-01 : f32
    %29 = vector.broadcast %cst_15 : f32 to vector<16x10xf32>
    %30 = arith.mulf %29, %28 : vector<16x10xf32>
    %31 = math.exp %30 : vector<16x10xf32>
    %32 = arith.mulf %1, %31 : vector<16x10xf32>
    %33 = arith.addf %27, %32 : vector<16x10xf32>
    %34 = arith.truncf %33 : vector<16x10xf32> to vector<16x10xbf16>
    %c224 = arith.constant 224 : index
    %c0_16 = arith.constant 0 : index
    %35 = vector.load %arg3[%c224, %c0_16] : memref<448x256xbf16, #tpu.memory_space<vmem>>, vector<10x64xbf16>
    %cst_17 = arith.constant dense<0.000000e+00> : vector<16x64xf32>
    %36 = tpu.matmul %34, %35, %cst_17 {dimension_numbers = #tpu.dot_dimension_numbers<[1], [0], [0], [1], [0, 0, 1, 1], [], []>} : vector<16x10xbf16>, vector<10x64xbf16>, vector<16x64xf32> -> vector<16x64xf32>
    %37 = arith.addf %36, %10 : vector<16x64xf32>
    %c3 = arith.constant 3 : index
    %c0_18 = arith.constant 0 : index
    %38 = vector.load %arg4[%c3, %c0_18] : memref<8x256xf32, #tpu.memory_space<vmem>>, vector<1x64xf32>
    %39 = vector.broadcast %38 : vector<1x64xf32> to vector<16x64xf32>
    %40 = arith.addf %37, %39 : vector<16x64xf32>
    %cst_19 = arith.constant 0.000000e+00 : f32
    %41 = vector.broadcast %cst_19 : f32 to vector<16x64xf32>
    %42 = arith.maximumf %40, %41 : vector<16x64xf32>
    %43 = arith.truncf %42 : vector<16x64xf32> to vector<16x64xbf16>
    %c240 = arith.constant 240 : index
    %c0_20 = arith.constant 0 : index
    %44 = vector.load %arg3[%c240, %c0_20] : memref<448x256xbf16, #tpu.memory_space<vmem>>, vector<64x128xbf16>
    %cst_21 = arith.constant dense<0.000000e+00> : vector<16x128xf32>
    %45 = tpu.matmul %43, %44, %cst_21 {dimension_numbers = #tpu.dot_dimension_numbers<[1], [0], [0], [1], [0, 0, 1, 1], [], []>} : vector<16x64xbf16>, vector<64x128xbf16>, vector<16x128xf32> -> vector<16x128xf32>
    %c4 = arith.constant 4 : index
    %c0_22 = arith.constant 0 : index
    %46 = vector.load %arg4[%c4, %c0_22] : memref<8x256xf32, #tpu.memory_space<vmem>>, vector<1x128xf32>
    %47 = vector.broadcast %46 : vector<1x128xf32> to vector<16x128xf32>
    %48 = arith.addf %45, %47 : vector<16x128xf32>
    %cst_23 = arith.constant 0.000000e+00 : f32
    %49 = vector.broadcast %cst_23 : f32 to vector<16x128xf32>
    %50 = arith.maximumf %48, %49 : vector<16x128xf32>
    %51 = arith.truncf %50 : vector<16x128xf32> to vector<16x128xbf16>
    %c304 = arith.constant 304 : index
    %c0_24 = arith.constant 0 : index
    %52 = vector.load %arg3[%c304, %c0_24] : memref<448x256xbf16, #tpu.memory_space<vmem>>, vector<128x128xbf16>
    %cst_25 = arith.constant dense<0.000000e+00> : vector<16x128xf32>
    %53 = tpu.matmul %51, %52, %cst_25 {dimension_numbers = #tpu.dot_dimension_numbers<[1], [0], [0], [1], [0, 0, 1, 1], [], []>} : vector<16x128xbf16>, vector<128x128xbf16>, vector<16x128xf32> -> vector<16x128xf32>
    %54 = vector.extract_strided_slice %53 {offsets = [0, 0], sizes = [16, 7], strides = [1, 1]} : vector<16x128xf32> to vector<16x7xf32>
    %c5 = arith.constant 5 : index
    %c0_26 = arith.constant 0 : index
    %55 = vector.load %arg4[%c5, %c0_26] : memref<8x256xf32, #tpu.memory_space<vmem>>, vector<1x7xf32>
    %56 = vector.broadcast %55 : vector<1x7xf32> to vector<16x7xf32>
    %57 = arith.addf %54, %56 : vector<16x7xf32>
    %c0_27 = arith.constant 0 : index
    %c0_28 = arith.constant 0 : index
    %58 = vector.load %arg5[%c0_27, %c0_28] : memref<16x27xf32, #tpu.memory_space<vmem>>, vector<16x7xf32>
    tpu.vector_store %arg5[%c0_27, %c0_28], %57 {strides = array<i32>} : memref<16x27xf32, #tpu.memory_space<vmem>>, vector<16x7xf32>,
    %c0_29 = arith.constant 0 : index
    %c7 = arith.constant 7 : index
    %59 = vector.load %arg5[%c0_29, %c7] : memref<16x27xf32, #tpu.memory_space<vmem>>, vector<16x20xf32>
    tpu.vector_store %arg5[%c0_29, %c7], %26 {strides = array<i32>} : memref<16x27xf32, #tpu.memory_space<vmem>>, vector<16x20xf32>,
    return
  }
  func.func @transform_0(%arg0: i32) -> (i32, i32) {
    %c0_i32 = arith.constant 0 : i32
    %c0_i32_0 = arith.constant 0 : i32
    return %arg0, %c0_i32 : i32, i32
  }
  func.func @transform_1(%arg0: i32) -> (i32, i32) {
    %c0_i32 = arith.constant 0 : i32
    %c0_i32_0 = arith.constant 0 : i32
    return %arg0, %c0_i32 : i32, i32
  }
  func.func @transform_2(%arg0: i32) -> (i32, i32) {
    %c0_i32 = arith.constant 0 : i32
    %c0_i32_0 = arith.constant 0 : i32
    %c0_i32_1 = arith.constant 0 : i32
    return %c0_i32, %c0_i32_0 : i32, i32
  }
  func.func @transform_3(%arg0: i32) -> (i32, i32) {
    %c0_i32 = arith.constant 0 : i32
    %c0_i32_0 = arith.constant 0 : i32
    %c0_i32_1 = arith.constant 0 : i32
    return %c0_i32, %c0_i32_0 : i32, i32
  }
  func.func @transform_4(%arg0: i32) -> (i32, i32) {
    %c0_i32 = arith.constant 0 : i32
    %c0_i32_0 = arith.constant 0 : i32
    return %arg0, %c0_i32 : i32, i32
  }
}

</mosaic_0001>

<llo_original>
// kernel: cvae_forward.1
$region0: #{cvae_forward.1}
  #allocation0 [shape = 'u32[]', space=smem, size = 0x4, offset = 0x4, fixed_abs, tag = 'smem constant byte address 0x4 - core index']
  #allocation1 [shape = 'u32[144,128]{1,0:T(1,128)}', space=vmem, size = 0x12000, scoped, tag = 'internal scratch']
  %s0 = inlined_call_operand.vmem [shape: bf16[16,32], index: 0, kind: input, shape index: {}]
  %s1 = inlined_call_operand.vmem [shape: f32[16,10], index: 1, kind: input, shape index: {}]
  %s2 = inlined_call_operand.hbm [shape: bf16[448,256], index: 2, kind: input, shape index: {}]
  %s3 = inlined_call_operand.vmem [shape: f32[8,256], index: 3, kind: input, shape index: {}]
  %s4 = inlined_call_operand.vmem [shape: f32[16,27], index: 4, kind: output, shape index: {}]
  %s5 = sld [smem:[#allocation0]]
  $region30: #{cvae_forward.1} parent=0
    _
  %s7 = ssub.s32 1, %s5
  %s8 = scalar_select 0, %s7, %s5
  $region1: #{cvae_forward.1} parent=0
    #allocation2 [shape = 'u8[229376]{0}', space=vmem, size = 0x38000, scoped, tag = 'input window, operand 2, single buffered']
    #allocation3 [shape = 's32[1]{0}', space=sflag, size = 0x4, scoped, tag = 'scoped memory for cvae_forward.1']
    %9 = vsyncpa [#allocation3], 0
    // Predicated region
    $region2: #{cvae_forward.1} parent=1 // pred_check
      _
    $region3: #{cvae_forward.1} parent=1 // pred_check_branch
      %11 = sbr.rel (0) target = $region5
    $region4: #{cvae_forward.1} parent=1 // pred_region
      _
    $region5: #{cvae_forward.1} parent=1 // pred_fallthru
      _
    // Predicated region
    $region6: #{cvae_forward.1} parent=1 // pred_check
      _
    $region7: #{cvae_forward.1} parent=1 // pred_check_branch
      %13 = sbr.rel (0) target = $region9
    $region8: #{cvae_forward.1} parent=1 // pred_region
      _
    $region9: #{cvae_forward.1} parent=1 // pred_fallthru
      _
    // Predicated region
    $region10: #{cvae_forward.1} parent=1 // pred_check
      _
    $region11: #{cvae_forward.1} parent=1 // pred_check_branch
      %15 = sbr.rel (0) target = $region13
    $region12: #{cvae_forward.1} parent=1 // pred_region
      %s17 = ssub.s32 7168, 7168
      %18 = vsyncadd [#allocation3], %s17
      %s19 = sshll.u32 [#allocation2], 4
      %s20 = int_to_ptr.vmem [resolvable:$true] %s19
      %25 = dma.hbm_to_vmem [thread:$0]  %s2, 7168, %s20, [#allocation3], 128, 128, 8
    $region13: #{cvae_forward.1} parent=1 // pred_fallthru
      _
    // Predicated region
    $region14: #{cvae_forward.1} parent=1 // pred_check
      _
    $region15: #{cvae_forward.1} parent=1 // pred_check_branch
      %27 = sbr.rel (0) target = $region17
    $region16: #{cvae_forward.1} parent=1 // pred_region
      _
    $region17: #{cvae_forward.1} parent=1 // pred_fallthru
      _
    // Predicated region
    $region18: #{cvae_forward.1} parent=1 // pred_check
      _
    $region19: #{cvae_forward.1} parent=1 // pred_check_branch
      %29 = sbr.rel (0) target = $region21
    $region20: #{cvae_forward.1} parent=1 // pred_region
      %30 = dma.done [#allocation3], 7168
    $region21: #{cvae_forward.1} parent=1 // pred_fallthru
      _
    %v32 = vld [vmem:[%s0] sm:$0xf]
    %v33 = vld [vmem:[%s0 + $0x4] sm:$0xf]
    %v34 = vld [vmem:[%s1] sm:$0xff]
    %v35 = vld [vmem:[%s1 + $0x8] sm:$0xff]
    %v36 = vld [vmem:[#allocation2] sm:$0xff]
    %v37 = vld [vmem:[#allocation2 + $0x8] sm:$0xff]
    %v38 = vld [vmem:[#allocation2 + $0x10] sm:$0xff]
    %v39 = vld [vmem:[#allocation2 + $0x18] sm:$0xff]
    %v42 = vunpack.c.l.b16 %v32
    %v43 = vunpack.c.l.b16 %v33
    %v44 = vpack.c.b16 %v43, %v42
    %v49 = vunpack.c.l.b16 %v36
    %v50 = vunpack.c.h.b16 %v36
    %v51 = vunpack.c.l.b16 %v37
    %v52 = vunpack.c.h.b16 %v37
    %v53 = vunpack.c.l.b16 %v38
    %v54 = vunpack.c.h.b16 %v38
    %v55 = vunpack.c.l.b16 %v39
    %v56 = vunpack.c.h.b16 %v39
    %v57 = vpack.c.b16 %v51, %v49
    %v58 = vpack.c.b16 %v52, %v50
    %v59 = vpack.c.b16 %v55, %v53
    %v60 = vpack.c.b16 %v56, %v54
    %vm65 = vcmask 261120
    %v67 = vsel %vm65, %v44, 0
    %69 = vmatprep.subr.bf16.mxu0 %v58
    %70 = vmatpush1.bf16.msra.mxu0 %v57
    %71 = vmatprep.subr.bf16.mxu0 %v60
    %72 = vmatpush1.bf16.msra.mxu0 %v59
    %73 = vmatprep.subr.bf16.mxu0 0
    %74 = vmatpush1.bf16.msra.mxu0 0
    %75 = vmatprep.subr.bf16.mxu0 0
    %76 = vmatpush1.bf16.msra.mxu0 0
    %77 = vmatprep.subr.bf16.mxu0 0
    %78 = vmatpush1.bf16.msra.mxu0 0
    %79 = vmatprep.subr.bf16.mxu0 0
    %80 = vmatpush1.bf16.msra.mxu0 0
    %81 = vmatprep.subr.bf16.mxu0 0
    %82 = vmatpush1.bf16.msra.mxu0 0
    %83 = vmatprep.subr.bf16.mxu0 0
    %84 = vmatpush1.bf16.msra.mxu0 0
    %85 = vmatprep.subr.bf16.mxu0 0
    %86 = vmatpush1.bf16.msra.mxu0 0
    %87 = vmatprep.subr.bf16.mxu0 0
    %88 = vmatpush1.bf16.msra.mxu0 0
    %89 = vmatprep.subr.bf16.mxu0 0
    %90 = vmatpush1.bf16.msra.mxu0 0
    %91 = vmatprep.subr.bf16.mxu0 0
    %92 = vmatpush1.bf16.msra.mxu0 0
    %93 = vmatprep.subr.bf16.mxu0 0
    %94 = vmatpush1.bf16.msra.mxu0 0
    %95 = vmatprep.subr.bf16.mxu0 0
    %96 = vmatpush1.bf16.msra.mxu0 0
    %97 = vmatprep.subr.bf16.mxu0 0
    %98 = vmatpush1.bf16.msra.mxu0 0
    %99 = vmatprep.subr.bf16.mxu0 0
    %100 = vmatpush1.bf16.msra.mxu0 0
    %101 = vmatprep.mubr.bf16.mxu0 0
    %102 = vmatmul.mubr.bf16.gmra.mrb[0].mxu0 %v67
    %v103 = vpop.f32.mrb[0].mxu0
    %v104 = vadd.f32 0.0, %v103
    %v105 = vpop.f32.mrb[0].mxu0
    %v106 = vadd.f32 0.0, %v105
    %v107 = vpop.f32.mrb[0].mxu0
    %v108 = vadd.f32 0.0, %v107
    %v109 = vpop.f32.mrb[0].mxu0
    %v110 = vadd.f32 0.0, %v109
    %111 = vdwg.mxu0
    %v112 = vld [vmem:[%s3] ss:$0 sm:$0xff]
    %v113 = vadd.f32 %v104, %v112
    %v114 = vadd.f32 %v108, %v112
    %v115 = vmax.f32 %v113, 0.0
    %v116 = vmax.f32 %v114, 0.0
    %v117 = vpack.c.bf16 %v116, %v115
    %v118 = vld [vmem:[#allocation2 + $0x20] sm:$0xf]
    %v119 = vld [vmem:[#allocation2 + $0x28] sm:$0xf]
    %v120 = vld [vmem:[#allocation2 + $0x30] sm:$0xf]
    %v121 = vld [vmem:[#allocation2 + $0x38] sm:$0xf]
    %v122 = vld [vmem:[#allocation2 + $0x40] sm:$0xf]
    %v123 = vld [vmem:[#allocation2 + $0x48] sm:$0xf]
    %v124 = vld [vmem:[#allocation2 + $0x50] sm:$0xf]
    %v125 = vld [vmem:[#allocation2 + $0x58] sm:$0xf]
    %v126 = vld [vmem:[#allocation2 + $0x60] sm:$0xf]
    %v127 = vld [vmem:[#allocation2 + $0x68] sm:$0xf]
    %v128 = vld [vmem:[#allocation2 + $0x70] sm:$0xf]
    %v129 = vld [vmem:[#allocation2 + $0x78] sm:$0xf]
    %v130 = vld [vmem:[#allocation2 + $0x80] sm:$0xf]
    %v131 = vld [vmem:[#allocation2 + $0x88] sm:$0xf]
    %v132 = vld [vmem:[#allocation2 + $0x90] sm:$0xf]
    %v133 = vld [vmem:[#allocation2 + $0x98] sm:$0xf]
    %v150 = vunpack.c.l.b16 %v118
    %v151 = vunpack.c.l.b16 %v119
    %v152 = vunpack.c.l.b16 %v120
    %v153 = vunpack.c.l.b16 %v121
    %v154 = vunpack.c.l.b16 %v122
    %v155 = vunpack.c.l.b16 %v123
    %v156 = vunpack.c.l.b16 %v124
    %v157 = vunpack.c.l.b16 %v125
    %v158 = vunpack.c.l.b16 %v126
    %v159 = vunpack.c.l.b16 %v127
    %v160 = vunpack.c.l.b16 %v128
    %v161 = vunpack.c.l.b16 %v129
    %v162 = vunpack.c.l.b16 %v130
    %v163 = vunpack.c.l.b16 %v131
    %v164 = vunpack.c.l.b16 %v132
    %v165 = vunpack.c.l.b16 %v133
    %v166 = vpack.c.b16 %v151, %v150
    %v167 = vpack.c.b16 %v153, %v152
    %v168 = vpack.c.b16 %v155, %v154
    %v169 = vpack.c.b16 %v157, %v156
    %v170 = vpack.c.b16 %v159, %v158
    %v171 = vpack.c.b16 %v161, %v160
    %v172 = vpack.c.b16 %v163, %v162
    %v173 = vpack.c.b16 %v165, %v164
    %182 = vmatprep.subr.bf16.mxu0 0
    %183 = vmatpush1.bf16.msra.mxu0 %v166
    %184 = vmatprep.subr.bf16.mxu0 0
    %185 = vmatpush1.bf16.msra.mxu0 %v167
    %186 = vmatprep.subr.bf16.mxu0 0
    %187 = vmatpush1.bf16.msra.mxu0 %v168
    %188 = vmatprep.subr.bf16.mxu0 0
    %189 = vmatpush1.bf16.msra.mxu0 %v169
    %190 = vmatprep.subr.bf16.mxu0 0
    %191 = vmatpush1.bf16.msra.mxu0 %v170
    %192 = vmatprep.subr.bf16.mxu0 0
    %193 = vmatpush1.bf16.msra.mxu0 %v171
    %194 = vmatprep.subr.bf16.mxu0 0
    %195 = vmatpush1.bf16.msra.mxu0 %v172
    %196 = vmatprep.subr.bf16.mxu0 0
    %197 = vmatpush1.bf16.msra.mxu0 %v173
    %198 = vmatprep.subr.bf16.mxu0 0
    %199 = vmatpush1.bf16.msra.mxu0 0
    %200 = vmatprep.subr.bf16.mxu0 0
    %201 = vmatpush1.bf16.msra.mxu0 0
    %202 = vmatprep.subr.bf16.mxu0 0
    %203 = vmatpush1.bf16.msra.mxu0 0
    %204 = vmatprep.subr.bf16.mxu0 0
    %205 = vmatpush1.bf16.msra.mxu0 0
    %206 = vmatprep.subr.bf16.mxu0 0
    %207 = vmatpush1.bf16.msra.mxu0 0
    %208 = vmatprep.subr.bf16.mxu0 0
    %209 = vmatpush1.bf16.msra.mxu0 0
    %210 = vmatprep.subr.bf16.mxu0 0
    %211 = vmatpush1.bf16.msra.mxu0 0
    %212 = vmatprep.subr.bf16.mxu0 0
    %213 = vmatpush1.bf16.msra.mxu0 0
    %214 = vmatprep.mubr.bf16.mxu0 0
    %215 = vmatmul.mubr.bf16.gmra.mrb[0].mxu0 %v117
    %v216 = vpop.f32.mrb[0].mxu0
    %v217 = vadd.f32 0.0, %v216
    %v218 = vpop.f32.mrb[0].mxu0
    %v219 = vpop.f32.mrb[0].mxu0
    %v220 = vadd.f32 0.0, %v219
    %v221 = vpop.f32.mrb[0].mxu0
    %222 = vdwg.mxu0
    %v223 = vld [vmem:[%s3 + $0x1] ss:$0 sm:$0xff]
    %v224 = vadd.f32 %v217, %v223
    %v225 = vadd.f32 %v220, %v223
    %v226 = vmax.f32 %v224, 0.0
    %v227 = vmax.f32 %v225, 0.0
    %v228 = vpack.c.bf16 %v227, %v226
    %v229 = vld [vmem:[#allocation2 + $0xa0] sm:$0xf]
    %v230 = vld [vmem:[#allocation2 + $0xa8] sm:$0xf]
    %v231 = vld [vmem:[#allocation2 + $0xb0] sm:$0xf]
    %v232 = vld [vmem:[#allocation2 + $0xb8] sm:$0xf]
    %v233 = vld [vmem:[#allocation2 + $0xc0] sm:$0xf]
    %v234 = vld [vmem:[#allocation2 + $0xc8] sm:$0xf]
    %v235 = vld [vmem:[#allocation2 + $0xd0] sm:$0xf]
    %v236 = vld [vmem:[#allocation2 + $0xd8] sm:$0xf]
    %v245 = vunpack.c.l.b16 %v229
    %v246 = vunpack.c.l.b16 %v230
    %v247 = vunpack.c.l.b16 %v231
    %v248 = vunpack.c.l.b16 %v232
    %v249 = vunpack.c.l.b16 %v233
    %v250 = vunpack.c.l.b16 %v234
    %v251 = vunpack.c.l.b16 %v235
    %v252 = vunpack.c.l.b16 %v236
    %v253 = vpack.c.b16 %v246, %v245
    %v254 = vpack.c.b16 %v248, %v247
    %v255 = vpack.c.b16 %v250, %v249
    %v256 = vpack.c.b16 %v252, %v251
    %vm261 = vcmask 523264
    %v263 = vsel %vm261, %v228, 0
    %265 = vmatprep.subr.bf16.mxu0 0
    %266 = vmatpush1.bf16.msra.mxu0 %v253
    %267 = vmatprep.subr.bf16.mxu0 0
    %268 = vmatpush1.bf16.msra.mxu0 %v254
    %269 = vmatprep.subr.bf16.mxu0 0
    %270 = vmatpush1.bf16.msra.mxu0 %v255
    %271 = vmatprep.subr.bf16.mxu0 0
    %272 = vmatpush1.bf16.msra.mxu0 %v256
    %273 = vmatprep.subr.bf16.mxu0 0
    %274 = vmatpush1.bf16.msra.mxu0 0
    %275 = vmatprep.subr.bf16.mxu0 0
    %276 = vmatpush1.bf16.msra.mxu0 0
    %277 = vmatprep.subr.bf16.mxu0 0
    %278 = vmatpush1.bf16.msra.mxu0 0
    %279 = vmatprep.subr.bf16.mxu0 0
    %280 = vmatpush1.bf16.msra.mxu0 0
    %281 = vmatprep.subr.bf16.mxu0 0
    %282 = vmatpush1.bf16.msra.mxu0 0
    %283 = vmatprep.subr.bf16.mxu0 0
    %284 = vmatpush1.bf16.msra.mxu0 0
    %285 = vmatprep.subr.bf16.mxu0 0
    %286 = vmatpush1.bf16.msra.mxu0 0
    %287 = vmatprep.subr.bf16.mxu0 0
    %288 = vmatpush1.bf16.msra.mxu0 0
    %289 = vmatprep.subr.bf16.mxu0 0
    %290 = vmatpush1.bf16.msra.mxu0 0
    %291 = vmatprep.subr.bf16.mxu0 0
    %292 = vmatpush1.bf16.msra.mxu0 0
    %293 = vmatprep.subr.bf16.mxu0 0
    %294 = vmatpush1.bf16.msra.mxu0 0
    %295 = vmatprep.subr.bf16.mxu0 0
    %296 = vmatpush1.bf16.msra.mxu0 0
    %297 = vmatprep.mubr.bf16.mxu0 0
    %298 = vmatmul.mubr.bf16.gmra.mrb[0].mxu0 %v263
    %v299 = vpop.f32.mrb[0].mxu0
    %v300 = vadd.f32 0.0, %v299
    %v301 = vpop.f32.mrb[0].mxu0
    %v302 = vpop.f32.mrb[0].mxu0
    %v303 = vadd.f32 0.0, %v302
    %v304 = vpop.f32.mrb[0].mxu0
    %305 = vdwg.mxu0
    %v306 = vld [vmem:[%s3 + $0x2] ss:$0 sm:$0xff]
    %v307 = vadd.f32 %v300, %v306
    %v308 = vadd.f32 %v303, %v306
    %v309 = vmul.f32 %v307, 0.5
    %v310 = vmul.f32 %v308, 0.5
    %v311 = vmul.f32 %v309, 1.442695
    %v312 = vpow.pop %v311
    %v313 = vmul.f32 %v310, 1.442695
    %v314 = vpow.pop %v313
    %317 = vrot.lane.b32.xlu0 %v312, 118
    %v318 = vpop.permute.xlu0 %317
    %319 = vrot.lane.b32.xlu0 %v314, 118
    %v320 = vpop.permute.xlu0 %319
    %v323 = vmul.f32 %v34, %v318
    %v324 = vmul.f32 %v35, %v320
    %v325 = vadd.f32 %v307, %v323
    %v326 = vadd.f32 %v308, %v324
    %v327 = vpack.c.bf16 %v326, %v325
    %v328 = vld [vmem:[#allocation2 + $0xe0] sm:$0xf]
    %v329 = vld [vmem:[#allocation2 + $0xe8] sm:$0x1]
    %v332 = vunpack.c.l.b16 %v328
    %v333 = vunpack.c.l.b16 %v329
    %v334 = vpack.c.b16 %v333, %v332
    %vm335 = vcmask 80896
    %v337 = vsel %vm335, %v327, 0
    %vm339 = vcmask 1044480
    %v341 = vsel %vm339, %v334, 0
    %343 = vmatprep.subr.bf16.mxu0 0
    %344 = vmatpush1.bf16.msra.mxu0 %v341
    %345 = vmatprep.subr.bf16.mxu0 0
    %346 = vmatpush1.bf16.msra.mxu0 0
    %347 = vmatprep.subr.bf16.mxu0 0
    %348 = vmatpush1.bf16.msra.mxu0 0
    %349 = vmatprep.subr.bf16.mxu0 0
    %350 = vmatpush1.bf16.msra.mxu0 0
    %351 = vmatprep.subr.bf16.mxu0 0
    %352 = vmatpush1.bf16.msra.mxu0 0
    %353 = vmatprep.subr.bf16.mxu0 0
    %354 = vmatpush1.bf16.msra.mxu0 0
    %355 = vmatprep.subr.bf16.mxu0 0
    %356 = vmatpush1.bf16.msra.mxu0 0
    %357 = vmatprep.subr.bf16.mxu0 0
    %358 = vmatpush1.bf16.msra.mxu0 0
    %359 = vmatprep.subr.bf16.mxu0 0
    %360 = vmatpush1.bf16.msra.mxu0 0
    %361 = vmatprep.subr.bf16.mxu0 0
    %362 = vmatpush1.bf16.msra.mxu0 0
    %363 = vmatprep.subr.bf16.mxu0 0
    %364 = vmatpush1.bf16.msra.mxu0 0
    %365 = vmatprep.subr.bf16.mxu0 0
    %366 = vmatpush1.bf16.msra.mxu0 0
    %367 = vmatprep.subr.bf16.mxu0 0
    %368 = vmatpush1.bf16.msra.mxu0 0
    %369 = vmatprep.subr.bf16.mxu0 0
    %370 = vmatpush1.bf16.msra.mxu0 0
    %371 = vmatprep.subr.bf16.mxu0 0
    %372 = vmatpush1.bf16.msra.mxu0 0
    %373 = vmatprep.subr.bf16.mxu0 0
    %374 = vmatpush1.bf16.msra.mxu0 0
    %375 = vmatprep.mubr.bf16.mxu0 0
    %376 = vmatmul.mubr.bf16.gmra.mrb[0].mxu0 %v337
    %v377 = vpop.f32.mrb[0].mxu0
    %v378 = vadd.f32 %v106, %v377
    %v379 = vpop.f32.mrb[0].mxu0
    %v380 = vpop.f32.mrb[0].mxu0
    %v381 = vadd.f32 %v110, %v380
    %v382 = vpop.f32.mrb[0].mxu0
    %383 = vdwg.mxu0
    %v384 = vld [vmem:[%s3 + $0x3] ss:$0 sm:$0xff]
    %v385 = vadd.f32 %v378, %v384
    %v386 = vadd.f32 %v381, %v384
    %v387 = vmax.f32 %v385, 0.0
    %v388 = vmax.f32 %v386, 0.0
    %v389 = vpack.c.bf16 %v388, %v387
    %v390 = vld [vmem:[#allocation2 + $0xf0] sm:$0xf]
    %v391 = vld [vmem:[#allocation2 + $0xf8] sm:$0xf]
    %v392 = vld [vmem:[#allocation2 + $0x100] sm:$0xf]
    %v393 = vld [vmem:[#allocation2 + $0x108] sm:$0xf]
    %v394 = vld [vmem:[#allocation2 + $0x110] sm:$0xf]
    %v395 = vld [vmem:[#allocation2 + $0x118] sm:$0xf]
    %v396 = vld [vmem:[#allocation2 + $0x120] sm:$0xf]
    %v397 = vld [vmem:[#allocation2 + $0x128] sm:$0xf]
    %v398 = vld [vmem:[%s3 + $0x4] ss:$0 sm:$0xff]
    %v407 = vunpack.c.l.b16 %v390
    %v408 = vunpack.c.l.b16 %v391
    %v409 = vunpack.c.l.b16 %v392
    %v410 = vunpack.c.l.b16 %v393
    %v411 = vunpack.c.l.b16 %v394
    %v412 = vunpack.c.l.b16 %v395
    %v413 = vunpack.c.l.b16 %v396
    %v414 = vunpack.c.l.b16 %v397
    %v415 = vpack.c.b16 %v408, %v407
    %v416 = vpack.c.b16 %v410, %v409
    %v417 = vpack.c.b16 %v412, %v411
    %v418 = vpack.c.b16 %v414, %v413
    %v424 = vsel %vm261, %v389, 0
    %426 = vmatprep.subr.bf16.mxu0 0
    %427 = vmatpush1.bf16.msra.mxu0 %v415
    %428 = vmatprep.subr.bf16.mxu0 0
    %429 = vmatpush1.bf16.msra.mxu0 %v416
    %430 = vmatprep.subr.bf16.mxu0 0
    %431 = vmatpush1.bf16.msra.mxu0 %v417
    %432 = vmatprep.subr.bf16.mxu0 0
    %433 = vmatpush1.bf16.msra.mxu0 %v418
    %434 = vmatprep.subr.bf16.mxu0 0
    %435 = vmatpush1.bf16.msra.mxu0 0
    %436 = vmatprep.subr.bf16.mxu0 0
    %437 = vmatpush1.bf16.msra.mxu0 0
    %438 = vmatprep.subr.bf16.mxu0 0
    %439 = vmatpush1.bf16.msra.mxu0 0
    %440 = vmatprep.subr.bf16.mxu0 0
    %441 = vmatpush1.bf16.msra.mxu0 0
    %442 = vmatprep.subr.bf16.mxu0 0
    %443 = vmatpush1.bf16.msra.mxu0 0
    %444 = vmatprep.subr.bf16.mxu0 0
    %445 = vmatpush1.bf16.msra.mxu0 0
    %446 = vmatprep.subr.bf16.mxu0 0
    %447 = vmatpush1.bf16.msra.mxu0 0
    %448 = vmatprep.subr.bf16.mxu0 0
    %449 = vmatpush1.bf16.msra.mxu0 0
    %450 = vmatprep.subr.bf16.mxu0 0
    %451 = vmatpush1.bf16.msra.mxu0 0
    %452 = vmatprep.subr.bf16.mxu0 0
    %453 = vmatpush1.bf16.msra.mxu0 0
    %454 = vmatprep.subr.bf16.mxu0 0
    %455 = vmatpush1.bf16.msra.mxu0 0
    %456 = vmatprep.subr.bf16.mxu0 0
    %457 = vmatpush1.bf16.msra.mxu0 0
    %458 = vmatprep.mubr.bf16.mxu0 0
    %459 = vmatmul.mubr.bf16.gmra.mrb[0].mxu0 %v424
    %v460 = vpop.f32.mrb[0].mxu0
    %v461 = vadd.f32 %v398, %v460
    %v462 = vpop.f32.mrb[0].mxu0
    %v463 = vpop.f32.mrb[0].mxu0
    %v464 = vadd.f32 %v398, %v463
    %v465 = vpop.f32.mrb[0].mxu0
    %466 = vdwg.mxu0
    %v467 = vmax.f32 %v461, 0.0
    %v468 = vmax.f32 %v464, 0.0
    %v469 = vpack.c.bf16 %v468, %v467
    %v470 = vld [vmem:[#allocation2 + $0x130] sm:$0xf]
    %v471 = vld [vmem:[#allocation2 + $0x138] sm:$0xf]
    %v472 = vld [vmem:[#allocation2 + $0x140] sm:$0xf]
    %v473 = vld [vmem:[#allocation2 + $0x148] sm:$0xf]
    %v474 = vld [vmem:[#allocation2 + $0x150] sm:$0xf]
    %v475 = vld [vmem:[#allocation2 + $0x158] sm:$0xf]
    %v476 = vld [vmem:[#allocation2 + $0x160] sm:$0xf]
    %v477 = vld [vmem:[#allocation2 + $0x168] sm:$0xf]
    %v478 = vld [vmem:[#allocation2 + $0x170] sm:$0xf]
    %v479 = vld [vmem:[#allocation2 + $0x178] sm:$0xf]
    %v480 = vld [vmem:[#allocation2 + $0x180] sm:$0xf]
    %v481 = vld [vmem:[#allocation2 + $0x188] sm:$0xf]
    %v482 = vld [vmem:[#allocation2 + $0x190] sm:$0xf]
    %v483 = vld [vmem:[#allocation2 + $0x198] sm:$0xf]
    %v484 = vld [vmem:[#allocation2 + $0x1a0] sm:$0xf]
    %v485 = vld [vmem:[#allocation2 + $0x1a8] sm:$0xf]
    %v502 = vunpack.c.l.b16 %v470
    %v503 = vunpack.c.l.b16 %v471
    %v504 = vunpack.c.l.b16 %v472
    %v505 = vunpack.c.l.b16 %v473
    %v506 = vunpack.c.l.b16 %v474
    %v507 = vunpack.c.l.b16 %v475
    %v508 = vunpack.c.l.b16 %v476
    %v509 = vunpack.c.l.b16 %v477
    %v510 = vunpack.c.l.b16 %v478
    %v511 = vunpack.c.l.b16 %v479
    %v512 = vunpack.c.l.b16 %v480
    %v513 = vunpack.c.l.b16 %v481
    %v514 = vunpack.c.l.b16 %v482
    %v515 = vunpack.c.l.b16 %v483
    %v516 = vunpack.c.l.b16 %v484
    %v517 = vunpack.c.l.b16 %v485
    %v518 = vpack.c.b16 %v503, %v502
    %v519 = vpack.c.b16 %v505, %v504
    %v520 = vpack.c.b16 %v507, %v506
    %v521 = vpack.c.b16 %v509, %v508
    %v522 = vpack.c.b16 %v511, %v510
    %v523 = vpack.c.b16 %v513, %v512
    %v524 = vpack.c.b16 %v515, %v514
    %v525 = vpack.c.b16 %v517, %v516
    %534 = vmatprep.subr.bf16.mxu0 0
    %535 = vmatpush1.bf16.msra.mxu0 %v518
    %536 = vmatprep.subr.bf16.mxu0 0
    %537 = vmatpush1.bf16.msra.mxu0 %v519
    %538 = vmatprep.subr.bf16.mxu0 0
    %539 = vmatpush1.bf16.msra.mxu0 %v520
    %540 = vmatprep.subr.bf16.mxu0 0
    %541 = vmatpush1.bf16.msra.mxu0 %v521
    %542 = vmatprep.subr.bf16.mxu0 0
    %543 = vmatpush1.bf16.msra.mxu0 %v522
    %544 = vmatprep.subr.bf16.mxu0 0
    %545 = vmatpush1.bf16.msra.mxu0 %v523
    %546 = vmatprep.subr.bf16.mxu0 0
    %547 = vmatpush1.bf16.msra.mxu0 %v524
    %548 = vmatprep.subr.bf16.mxu0 0
    %549 = vmatpush1.bf16.msra.mxu0 %v525
    %550 = vmatprep.subr.bf16.mxu0 0
    %551 = vmatpush1.bf16.msra.mxu0 0
    %552 = vmatprep.subr.bf16.mxu0 0
    %553 = vmatpush1.bf16.msra.mxu0 0
    %554 = vmatprep.subr.bf16.mxu0 0
    %555 = vmatpush1.bf16.msra.mxu0 0
    %556 = vmatprep.subr.bf16.mxu0 0
    %557 = vmatpush1.bf16.msra.mxu0 0
    %558 = vmatprep.subr.bf16.mxu0 0
    %559 = vmatpush1.bf16.msra.mxu0 0
    %560 = vmatprep.subr.bf16.mxu0 0
    %561 = vmatpush1.bf16.msra.mxu0 0
    %562 = vmatprep.subr.bf16.mxu0 0
    %563 = vmatpush1.bf16.msra.mxu0 0
    %564 = vmatprep.subr.bf16.mxu0 0
    %565 = vmatpush1.bf16.msra.mxu0 0
    %566 = vmatprep.mubr.bf16.mxu0 0
    %567 = vmatmul.mubr.bf16.gmra.mrb[0].mxu0 %v469
    %v568 = vpop.f32.mrb[0].mxu0
    %v569 = vadd.f32 0.0, %v568
    %v570 = vpop.f32.mrb[0].mxu0
    %v571 = vpop.f32.mrb[0].mxu0
    %v572 = vadd.f32 0.0, %v571
    %v573 = vpop.f32.mrb[0].mxu0
    %574 = vdwg.mxu0
    %v575 = vld [vmem:[%s3 + $0x5] ss:$0 sm:$0xff]
    %v576 = vadd.f32 %v569, %v575
    %v577 = vadd.f32 %v572, %v575
    %vm578 = vcmask 56320
    %579 = vst.msk [vmem:[%s4] sm:$0xff] %vm578, %v576
    %580 = vst.msk [vmem:[%s4 + $0x8] sm:$0xff] %vm578, %v577
    %583 = vrot.lane.b32.xlu0 %v307, 7
    %v584 = vpop.permute.xlu0 %583
    %585 = vrot.lane.b32.xlu0 %v308, 7
    %v586 = vpop.permute.xlu0 %585
    %vm589 = vcmask 220216
    %590 = vst.msk [vmem:[%s4] sm:$0xff] %vm589, %v584
    %591 = vst.msk [vmem:[%s4 + $0x8] sm:$0xff] %vm589, %v586
    // Predicated region
    $region22: #{cvae_forward.1} parent=1 // pred_check
      _
    $region23: #{cvae_forward.1} parent=1 // pred_check_branch
      %593 = sbr.rel (0) target = $region25
    $region24: #{cvae_forward.1} parent=1 // pred_region
      _
    $region25: #{cvae_forward.1} parent=1 // pred_fallthru
      _
    // Predicated region
    $region26: #{cvae_forward.1} parent=1 // pred_check
      _
    $region27: #{cvae_forward.1} parent=1 // pred_check_branch
      %595 = sbr.rel (0) target = $region29
    $region28: #{cvae_forward.1} parent=1 // pred_region
      _
    $region29: #{cvae_forward.1} parent=1 // pred_fallthru
      _
    %596 = vsyncpa [#allocation3], 1

</llo_original>
